<compile_context>
chip_gen: v6e
topology: v6e:2x2x1
jax: 0.10.0
libtpu: 0.0.40
codegen_flags: <defaults>
</compile_context>

<pallas_src>
import jax
import jax.numpy as jnp
from jax.experimental import pallas as pl
from jax.experimental.pallas import tpu as pltpu

D_IN = 64   # fc1 input features
D_H = 32    # fc1 output features


# ----------------------------------------------------------------------------
# Fused head kernel: fc1 + ReLU + fc2 + sigmoid
# ----------------------------------------------------------------------------
def head_kernel(x_ref, w1_ref, b1_ref, w2_ref, b2_ref, o_ref):
    """x_ref: (tb, 64); w1_ref: (64, 32); b1_ref: (1, 32);
    w2_ref: (1, 32) (fc2 weight as a row); b2_ref: (1, 1); o_ref: (tb, 1)."""
    x = x_ref[...]                                              # (tb, 64)

    # fc1 + ReLU on the MXU (f32 accumulation).
    h1 = jnp.maximum(
        jnp.dot(x, w1_ref[...], preferred_element_type=jnp.float32)
        + b1_ref[...],
        0.0)                                                    # (tb, 32)

    # fc2 (N=1): VPU multiply + XLU lane reduction (no sub-128 MXU output).
    logit = jnp.sum(h1 * w2_ref[...], axis=-1, keepdims=True) + b2_ref[...]

    # Dense (tb, 1) store — HBM writeback is 4 B/row.
    o_ref[...] = jax.nn.sigmoid(logit)


def _round_up(n, m):
    return ((n + m - 1) // m) * m


def head_forward(x, w1, b1, w2_row, b2, *, block_b=1024):
    """x: (B, 64) float32 -> (B, 1) float32 == sigmoid(fc2(relu(fc1(x))))."""
    B, d_in = x.shape
    assert d_in == D_IN

    # Only tiny batches get padded (to the 8-sublane minimum). Larger batches
    # run un-padded; the partial last tile is masked by Pallas.
    bp = B
    if bp < 8:
        bp = 8
        x = jnp.pad(x, ((0, bp - B), (0, 0)))

    # Batch tile: large (amortizes ~0.35 us/step overhead), multiple of 8,
    # capped so the grid has >= 2 steps when possible (v7x megacore sharding).
    tb = min(block_b, _round_up(bp, 8))
    if bp >= 16:
        tb = min(tb, _round_up(pl.cdiv(bp, 2), 8))
    grid = pl.cdiv(bp, tb)

    out = pl.pallas_call(
        head_kernel,
        out_shape=jax.ShapeDtypeStruct((bp, 1), jnp.float32),
        grid_spec=pltpu.PrefetchScalarGridSpec(
            num_scalar_prefetch=0,
            grid=(grid,),
            in_specs=[
                pl.BlockSpec((tb, D_IN), lambda i: (i, 0)),   # x tile
                pl.BlockSpec((D_IN, D_H), lambda i: (0, 0)),  # fc1 weight^T
                pl.BlockSpec((1, D_H), lambda i: (0, 0)),     # fc1 bias
                pl.BlockSpec((1, D_H), lambda i: (0, 0)),     # fc2 weight row
                pl.BlockSpec((1, 1), lambda i: (0, 0)),       # fc2 bias
            ],
            out_specs=pl.BlockSpec((tb, 1), lambda i: (i, 0)),
        ),
        compiler_params=pltpu.CompilerParams(
            dimension_semantics=("parallel",),
        ),
    )(x, w1, b1, w2_row, b2)

    return out if bp == B else out[:B]


# ----------------------------------------------------------------------------
# Parameter construction (PyTorch nn.Linear default uniform init)
# ----------------------------------------------------------------------------
def _uniform(key, shape, bound):
    return jax.random.uniform(key, shape, jnp.float32, -bound, bound)


def init_params(key):
    k1, k2, k3, k4 = jax.random.split(key, 4)
    b1_bound = 1.0 / jnp.sqrt(jnp.float32(D_IN))
    b2_bound = 1.0 / jnp.sqrt(jnp.float32(D_H))
    return {
        "fc1_w": _uniform(k1, (D_IN, D_H), b1_bound),   # == W1^T
        "fc1_b": _uniform(k2, (1, D_H), b1_bound),
        "fc2_w": _uniform(k3, (1, D_H), b2_bound),      # fc2 weight as a row
        "fc2_b": _uniform(k4, (1, 1), b2_bound),
    }


@jax.jit
def head_module_forward(params, x):
    return head_forward(x, params["fc1_w"], params["fc1_b"],
                        params["fc2_w"], params["fc2_b"])


def head_reference(params, x):
    h1 = jnp.maximum(x @ params["fc1_w"] + params["fc1_b"], 0.0)
    return jax.nn.sigmoid(
        jnp.sum(h1 * params["fc2_w"], axis=-1, keepdims=True)
        + params["fc2_b"])


if __name__ == "__main__":
    root = jax.random.PRNGKey(0)
    k_params, k_x = jax.random.split(root)
    params = init_params(k_params)

    # Primary small test (batch=2) plus a ragged and a multi-tile batch to
    # exercise the partial-tile and 2-grid-step paths.
    for B in (2, 13, 272):
        kx = jax.random.fold_in(k_x, B)
        x = jax.random.normal(kx, (B, D_IN), jnp.float32)

        y = head_module_forward(params, x)
        jax.block_until_ready(y)

        y_ref = head_reference(params, x)
        assert y.shape == (B, 1)
        assert bool(jnp.all(jnp.isfinite(y)))
        assert bool(jnp.all((y >= 0.0) & (y <= 1.0)))
        assert bool(jnp.allclose(y, y_ref, atol=1e-5, rtol=1e-5))

    print("KERNEL_OK")
</pallas_src>

<mosaic_0001>
module attributes {stable_mosaic.version = 11 : i64} {
  func.func @head_kernel(%arg0: i32, %arg1: memref<8x64xf32, #tpu.memory_space<vmem>>, %arg2: memref<64x32xf32, #tpu.memory_space<vmem>>, %arg3: memref<1x32xf32, #tpu.memory_space<vmem>>, %arg4: memref<1x32xf32, #tpu.memory_space<vmem>>, %arg5: memref<1x1xf32, #tpu.memory_space<vmem>>, %arg6: memref<8x1xf32, #tpu.memory_space<vmem>>) attributes {dimension_semantics = [#tpu.dimension_semantics<parallel>], iteration_bounds = array<i64: 1>, scalar_prefetch = 0 : i64, scratch_operands = 0 : i64, tpu.core_type = #tpu.core_type<tc>, window_params = [{transform_indices = @transform_0, window_bounds = array<i64: 8, 64>}, {pipeline_mode = #tpu.pipeline_mode<synchronous>, transform_indices = @transform_1, window_bounds = array<i64: 64, 32>}, {pipeline_mode = #tpu.pipeline_mode<synchronous>, transform_indices = @transform_2, window_bounds = array<i64: 1, 32>}, {pipeline_mode = #tpu.pipeline_mode<synchronous>, transform_indices = @transform_3, window_bounds = array<i64: 1, 32>}, {pipeline_mode = #tpu.pipeline_mode<synchronous>, transform_indices = @transform_4, window_bounds = array<i64: 1, 1>}, {transform_indices = @transform_5, window_bounds = array<i64: 8, 1>}]} {
    %c0 = arith.constant 0 : index
    %c0_0 = arith.constant 0 : index
    %0 = vector.load %arg1[%c0, %c0_0] : memref<8x64xf32, #tpu.memory_space<vmem>>, vector<8x64xf32>
    %c0_1 = arith.constant 0 : index
    %c0_2 = arith.constant 0 : index
    %1 = vector.load %arg2[%c0_1, %c0_2] : memref<64x32xf32, #tpu.memory_space<vmem>>, vector<64x32xf32>
    %cst = arith.constant dense<0.000000e+00> : vector<8x32xf32>
    %2 = tpu.matmul %0, %1, %cst {dimension_numbers = #tpu.dot_dimension_numbers<[1], [0], [0], [1], [0, 0, 1, 1], [], []>} : vector<8x64xf32>, vector<64x32xf32>, vector<8x32xf32> -> vector<8x32xf32>
    %c0_3 = arith.constant 0 : index
    %c0_4 = arith.constant 0 : index
    %3 = vector.load %arg3[%c0_3, %c0_4] : memref<1x32xf32, #tpu.memory_space<vmem>>, vector<1x32xf32>
    %4 = vector.broadcast %3 : vector<1x32xf32> to vector<8x32xf32>
    %5 = arith.addf %2, %4 : vector<8x32xf32>
    %cst_5 = arith.constant 0.000000e+00 : f32
    %6 = vector.broadcast %cst_5 : f32 to vector<8x32xf32>
    %7 = arith.maximumf %5, %6 : vector<8x32xf32>
    %c0_6 = arith.constant 0 : index
    %c0_7 = arith.constant 0 : index
    %8 = vector.load %arg4[%c0_6, %c0_7] : memref<1x32xf32, #tpu.memory_space<vmem>>, vector<1x32xf32>
    %9 = vector.broadcast %8 : vector<1x32xf32> to vector<8x32xf32>
    %10 = arith.mulf %7, %9 : vector<8x32xf32>
    %cst_8 = arith.constant dense<0.000000e+00> : vector<8xf32>
    %11 = vector.multi_reduction <add>, %10, %cst_8 [1] : vector<8x32xf32> to vector<8xf32>
    %12 = vector.shape_cast %11 : vector<8xf32> to vector<8x1xf32>
    %c0_9 = arith.constant 0 : index
    %c0_10 = arith.constant 0 : index
    %13 = vector.load %arg5[%c0_9, %c0_10] : memref<1x1xf32, #tpu.memory_space<vmem>>, vector<1x1xf32>
    %14 = vector.broadcast %13 : vector<1x1xf32> to vector<8x1xf32>
    %15 = arith.addf %12, %14 : vector<8x1xf32>
    %16 = arith.negf %15 : vector<8x1xf32>
    %17 = math.exp %16 : vector<8x1xf32>
    %cst_11 = arith.constant 1.000000e+00 : f32
    %18 = vector.broadcast %cst_11 : f32 to vector<8x1xf32>
    %19 = arith.addf %18, %17 : vector<8x1xf32>
    %20 = arith.divf %18, %19 : vector<8x1xf32>
    %c0_12 = arith.constant 0 : index
    %c0_13 = arith.constant 0 : index
    %21 = vector.load %arg6[%c0_12, %c0_13] : memref<8x1xf32, #tpu.memory_space<vmem>>, vector<8x1xf32>
    tpu.vector_store %arg6[%c0_12, %c0_13], %20 {strides = array<i32>} : memref<8x1xf32, #tpu.memory_space<vmem>>, vector<8x1xf32>,
    return
  }
  func.func @transform_0(%arg0: i32) -> (i32, i32) {
    %c0_i32 = arith.constant 0 : i32
    %c0_i32_0 = arith.constant 0 : i32
    return %arg0, %c0_i32 : i32, i32
  }
  func.func @transform_1(%arg0: i32) -> (i32, i32) {
    %c0_i32 = arith.constant 0 : i32
    %c0_i32_0 = arith.constant 0 : i32
    %c0_i32_1 = arith.constant 0 : i32
    return %c0_i32, %c0_i32_0 : i32, i32
  }
  func.func @transform_2(%arg0: i32) -> (i32, i32) {
    %c0_i32 = arith.constant 0 : i32
    %c0_i32_0 = arith.constant 0 : i32
    %c0_i32_1 = arith.constant 0 : i32
    return %c0_i32, %c0_i32_0 : i32, i32
  }
  func.func @transform_3(%arg0: i32) -> (i32, i32) {
    %c0_i32 = arith.constant 0 : i32
    %c0_i32_0 = arith.constant 0 : i32
    %c0_i32_1 = arith.constant 0 : i32
    return %c0_i32, %c0_i32_0 : i32, i32
  }
  func.func @transform_4(%arg0: i32) -> (i32, i32) {
    %c0_i32 = arith.constant 0 : i32
    %c0_i32_0 = arith.constant 0 : i32
    %c0_i32_1 = arith.constant 0 : i32
    return %c0_i32, %c0_i32_0 : i32, i32
  }
  func.func @transform_5(%arg0: i32) -> (i32, i32) {
    %c0_i32 = arith.constant 0 : i32
    %c0_i32_0 = arith.constant 0 : i32
    return %arg0, %c0_i32 : i32, i32
  }
}

</mosaic_0001>

<llo_original>
// kernel: head_module_forward.1
$region0: #{head_module_forward.1}
  #allocation0 [shape = 'u32[]', space=smem, size = 0x4, offset = 0x4, fixed_abs, tag = 'smem constant byte address 0x4 - core index']
  #allocation1 [shape = 'u32[144,128]{1,0:T(1,128)}', space=vmem, size = 0x12000, scoped, tag = 'internal scratch']
  #allocation2 [shape = 'f32[1,1]{1,0:T(1,128)S(1)}', space=vmem, size = 0x200, scoped, tag = 'scoped memory for head_module_forward.1']
  %s0 = inlined_call_operand.vmem [shape: f32[8,64], index: 0, kind: input, shape index: {}]
  %s1 = inlined_call_operand.vmem [shape: f32[64,32], index: 1, kind: input, shape index: {}]
  %s2 = inlined_call_operand.vmem [shape: f32[1,32], index: 2, kind: input, shape index: {}]
  %s3 = inlined_call_operand.vmem [shape: f32[1,32], index: 3, kind: input, shape index: {}]
  %s4 = inlined_call_operand.<no memory space> [shape: f32[1,1], index: 4, kind: input, shape index: {}]
  %s5 = inlined_call_operand.vmem [shape: f32[8,1], index: 5, kind: output, shape index: {}]
  %s6 = sld [smem:[#allocation0]]
  $region30: #{head_module_forward.1} parent=0
    _
  %s8 = ssub.s32 1, %s6
  %s9 = scalar_select 0, %s8, %s6
  %v10 = vstv %s4
  %11 = vst [vmem:[#allocation2] sm:$0x1] %v10
  // Predicated region
  $region2: #{head_module_forward.1} parent=0 // pred_check
    _
  $region3: #{head_module_forward.1} parent=0 // pred_check_branch
    %13 = sbr.rel (0) target = $region5
  $region4: #{head_module_forward.1} parent=0 // pred_region
    _
  $region5: #{head_module_forward.1} parent=0 // pred_fallthru
    _
  // Predicated region
  $region6: #{head_module_forward.1} parent=0 // pred_check
    _
  $region7: #{head_module_forward.1} parent=0 // pred_check_branch
    %15 = sbr.rel (0) target = $region9
  $region8: #{head_module_forward.1} parent=0 // pred_region
    _
  $region9: #{head_module_forward.1} parent=0 // pred_fallthru
    _
  // Predicated region
  $region10: #{head_module_forward.1} parent=0 // pred_check
    _
  $region11: #{head_module_forward.1} parent=0 // pred_check_branch
    %17 = sbr.rel (0) target = $region13
  $region12: #{head_module_forward.1} parent=0 // pred_region
    _
  $region13: #{head_module_forward.1} parent=0 // pred_fallthru
    _
  // Predicated region
  $region14: #{head_module_forward.1} parent=0 // pred_check
    _
  $region15: #{head_module_forward.1} parent=0 // pred_check_branch
    %19 = sbr.rel (0) target = $region17
  $region16: #{head_module_forward.1} parent=0 // pred_region
    _
  $region17: #{head_module_forward.1} parent=0 // pred_fallthru
    _
  // Predicated region
  $region18: #{head_module_forward.1} parent=0 // pred_check
    _
  $region19: #{head_module_forward.1} parent=0 // pred_check_branch
    %21 = sbr.rel (0) target = $region21
  $region20: #{head_module_forward.1} parent=0 // pred_region
    _
  $region21: #{head_module_forward.1} parent=0 // pred_fallthru
    _
  %v22 = vld [vmem:[%s0] sm:$0xff]
  %v23 = vld [vmem:[%s1] sm:$0xff]
  %v24 = vld [vmem:[%s1 + $0x8] sm:$0xff]
  %v25 = vld [vmem:[%s1 + $0x10] sm:$0xff]
  %v26 = vld [vmem:[%s1 + $0x18] sm:$0xff]
  %v27 = vld [vmem:[%s1 + $0x20] sm:$0xff]
  %v28 = vld [vmem:[%s1 + $0x28] sm:$0xff]
  %v29 = vld [vmem:[%s1 + $0x30] sm:$0xff]
  %v30 = vld [vmem:[%s1 + $0x38] sm:$0xff]
  %v31 = vld [vmem:[%s2] sm:$0x1]
  %v33 = vlaneseq
  %v34 = vshrl.u32 %v33, 7
  %v35 = vsub.s32 0, %v34
  %v36 = vrot.slane %v31, %v35
  %vm38 = vcmask 523264
  %v40 = vsel %vm38, %v22, 0
  %42 = vmatprep.subr.mxu0 0.0
  %43 = vmatpush1.msra.mxu0 0.0
  %44 = vmatprep.subr.mxu0 0.0
  %45 = vmatpush1.msra.mxu0 0.0
  %46 = vmatprep.subr.mxu0 0.0
  %47 = vmatpush1.msra.mxu0 0.0
  %48 = vmatprep.subr.mxu0 0.0
  %49 = vmatpush1.msra.mxu0 0.0
  %50 = vmatprep.subr.mxu0 0.0
  %51 = vmatpush1.msra.mxu0 0.0
  %52 = vmatprep.subr.mxu0 0.0
  %53 = vmatpush1.msra.mxu0 0.0
  %54 = vmatprep.subr.mxu0 0.0
  %55 = vmatpush1.msra.mxu0 0.0
  %56 = vmatprep.subr.mxu0 0.0
  %57 = vmatpush1.msra.mxu0 0.0
  %58 = vmatprep.subr.mxu0 0.0
  %59 = vmatpush1.msra.mxu0 %v30
  %60 = vmatprep.subr.mxu0 0.0
  %61 = vmatpush1.msra.mxu0 %v29
  %62 = vmatprep.subr.mxu0 0.0
  %63 = vmatpush1.msra.mxu0 %v28
  %64 = vmatprep.subr.mxu0 0.0
  %65 = vmatpush1.msra.mxu0 %v27
  %66 = vmatprep.subr.mxu0 0.0
  %67 = vmatpush1.msra.mxu0 %v26
  %68 = vmatprep.subr.mxu0 0.0
  %69 = vmatpush1.msra.mxu0 %v25
  %70 = vmatprep.subr.mxu0 0.0
  %71 = vmatpush1.msra.mxu0 %v24
  %72 = vmatprep.subr.mxu0 0.0
  %73 = vmatpush1.msra.mxu0 %v23
  %74 = vmatprep.subr.mxu0 0.0
  %75 = vmatpush2.msra.mxu0 0.0
  %76 = vmatprep.subr.mxu0 0.0
  %77 = vmatpush2.msra.mxu0 0.0
  %78 = vmatprep.subr.mxu0 0.0
  %79 = vmatpush2.msra.mxu0 0.0
  %80 = vmatprep.subr.mxu0 0.0
  %81 = vmatpush2.msra.mxu0 0.0
  %82 = vmatprep.subr.mxu0 0.0
  %83 = vmatpush2.msra.mxu0 0.0
  %84 = vmatprep.subr.mxu0 0.0
  %85 = vmatpush2.msra.mxu0 0.0
  %86 = vmatprep.subr.mxu0 0.0
  %87 = vmatpush2.msra.mxu0 0.0
  %88 = vmatprep.subr.mxu0 0.0
  %89 = vmatpush2.msra.mxu0 0.0
  %90 = vmatprep.subr.mxu0 0.0
  %91 = vmatpush2.msra.mxu0 0.0
  %92 = vmatprep.subr.mxu0 0.0
  %93 = vmatpush2.msra.mxu0 0.0
  %94 = vmatprep.subr.mxu0 0.0
  %95 = vmatpush2.msra.mxu0 0.0
  %96 = vmatprep.subr.mxu0 0.0
  %97 = vmatpush2.msra.mxu0 0.0
  %98 = vmatprep.subr.mxu0 0.0
  %99 = vmatpush2.msra.mxu0 0.0
  %100 = vmatprep.subr.mxu0 0.0
  %101 = vmatpush2.msra.mxu0 0.0
  %102 = vmatprep.subr.mxu0 0.0
  %103 = vmatpush2.msra.mxu0 0.0
  %104 = vmatprep.subr.mxu0 0.0
  %105 = vmatpush2.msra.mxu0 0.0
  %106 = vmatprep.mubr.f32.mxu0 0.0
  %107 = vmatmul.mubr.f32.gmra.mxu0 %v40
  %v108 = vpop.f32.mrf.mxu0
  %v109 = vadd.f32 %v36, %v108
  %v110 = vpop.f32.mrf.mxu0
  %111 = vdwg.mxu0
  %v112 = vmax.f32 %v109, 0.0
  %v113 = vld [vmem:[%s3] sm:$0x1]
  %v115 = vlaneseq
  %v116 = vshrl.u32 %v115, 7
  %v117 = vsub.s32 0, %v116
  %v118 = vrot.slane %v113, %v117
  %v120 = vmul.f32 %v112, %v118
  %vm121 = vcmask 261120
  %v122 = vsel %vm121, %v120, 0.0
  %123 = vadd.xlane.f32.xlu0 %v122
  %v124 = vpop.xlane.xlu0 %123
  %v125 = vld [vmem:[#allocation2] sm:$0x1]
  %v127 = vlaneseq
  %v128 = vshrl.u32 %v127, 7
  %v129 = vsub.s32 0, %v128
  %v130 = vrot.slane %v125, %v129
  %v132 = vadd.f32 %v124, %v130
  %v133 = vxor.u32 %v132, 2147483648
  %v134 = vmul.f32 %v133, 1.442695
  %v135 = vpow.pop %v134
  %v136 = vadd.f32 %v135, 1.0
  %v137 = vrcp.pop %v136
  %v138 = vmul.f32 1.0, %v137
  %vm139 = vcmask 7168
  %140 = vst.msk [vmem:[%s5] sm:$0xff] %vm139, %v138
  // Predicated region
  $region22: #{head_module_forward.1} parent=0 // pred_check
    _
  $region23: #{head_module_forward.1} parent=0 // pred_check_branch
    %142 = sbr.rel (0) target = $region25
  $region24: #{head_module_forward.1} parent=0 // pred_region
    _
  $region25: #{head_module_forward.1} parent=0 // pred_fallthru
    _
  // Predicated region
  $region26: #{head_module_forward.1} parent=0 // pred_check
    _
  $region27: #{head_module_forward.1} parent=0 // pred_check_branch
    %144 = sbr.rel (0) target = $region29
  $region28: #{head_module_forward.1} parent=0 // pred_region
    _
  $region29: #{head_module_forward.1} parent=0 // pred_fallthru
    _

</llo_original>
